<compile_context>
chip_gen: v6e
topology: v6e:2x2x1
jax: 0.10.0
libtpu: 0.0.40
codegen_flags: <defaults>
</compile_context>

<pallas_src>
import functools

import jax
import jax.numpy as jnp
from jax.experimental import pallas as pl
from jax.experimental.pallas import tpu as pltpu


def highway_kernel(x_ref, w_ref, b_ref, o_ref, *, hidden_dim):
    x = x_ref[...]
    # Single fused GEMM: [tile_m, H] @ [H, 2H] -> [tile_m, 2H], f32 accumulation.
    fused = (
        jnp.dot(x, w_ref[...], preferred_element_type=jnp.float32) + b_ref[...]
    )
    # transformed_x = relu(linear(x)); gated_x = sigmoid(gate(x))
    t = jnp.maximum(fused[:, :hidden_dim], 0.0)
    g = jax.nn.sigmoid(fused[:, hidden_dim:])
    # out = t * g + (1 - g) * t   (literal reproduction of the reference expression)
    o_ref[...] = (t * g + (1.0 - g) * t).astype(o_ref.dtype)


def highway_forward(
    x,
    w_lin,
    b_lin,
    w_gate,
    b_gate,
    *,
    tile_m=512,
    vmem_limit_bytes=64 * 1024 * 1024,
):
    """x: [N, H] float32. Weights [H, H] (in, out) layout, biases [1, H]."""
    N, H = x.shape

    # Fuse the two linear layers into one [H, 2H] weight / [1, 2H] bias so the kernel
    # does a single, wider matmul (same numerics: output columns are independent).
    w_fused = jnp.concatenate([w_lin, w_gate], axis=1)   # [H, 2H]
    b_fused = jnp.concatenate([b_lin, b_gate], axis=1)   # [1, 2H]

    # Choose the largest row tile <= tile_m that is a multiple of 8 (sublane), then pad
    # N up to a multiple of it. Padded rows produce garbage that is sliced off below.
    tm = min(tile_m, max(N, 8))
    tm = max(8, (tm // 8) * 8)
    n_pad = pl.cdiv(N, tm) * tm
    x_in = jnp.pad(x, ((0, n_pad - N), (0, 0))) if n_pad != N else x

    grid = (n_pad // tm,)

    out = pl.pallas_call(
        functools.partial(highway_kernel, hidden_dim=H),
        out_shape=jax.ShapeDtypeStruct((n_pad, H), x.dtype),
        grid_spec=pltpu.PrefetchScalarGridSpec(
            num_scalar_prefetch=0,
            grid=grid,
            in_specs=[
                pl.BlockSpec((tm, H), lambda i: (i, 0)),      # x row tile
                pl.BlockSpec((H, 2 * H), lambda i: (0, 0)),   # fused weight (resident)
                pl.BlockSpec((1, 2 * H), lambda i: (0, 0)),   # fused bias (resident)
            ],
            out_specs=pl.BlockSpec((tm, H), lambda i: (i, 0)),
        ),
        compiler_params=pltpu.CompilerParams(
            dimension_semantics=("parallel",),
            vmem_limit_bytes=vmem_limit_bytes,
        ),
    )(x_in, w_fused, b_fused)

    return out[:N] if n_pad != N else out


def reference_forward(x, w_lin, b_lin, w_gate, b_gate):
    t = jax.nn.relu(x @ w_lin + b_lin)
    g = jax.nn.sigmoid(x @ w_gate + b_gate)
    return t * g + (1.0 - g) * t


if __name__ == "__main__":
    hidden_dim = 32
    batch = 16  # flattened token rows

    key = jax.random.PRNGKey(0)
    kx, k1, k2, k3, k4 = jax.random.split(key, 5)

    x = jax.random.normal(kx, (batch, hidden_dim), dtype=jnp.float32)

    # Deterministic parameter init (mimics nn.Linear uniform(-1/sqrt(H), 1/sqrt(H))).
    bound = 1.0 / (hidden_dim ** 0.5)
    w_lin = jax.random.uniform(k1, (hidden_dim, hidden_dim), jnp.float32, -bound, bound)
    b_lin = jax.random.uniform(k2, (1, hidden_dim), jnp.float32, -bound, bound)
    w_gate = jax.random.uniform(k3, (hidden_dim, hidden_dim), jnp.float32, -bound, bound)
    b_gate = jax.random.uniform(k4, (1, hidden_dim), jnp.float32, -bound, bound)

    out = highway_forward(x, w_lin, b_lin, w_gate, b_gate)
    out = jax.block_until_ready(out)

    ref = reference_forward(x, w_lin, b_lin, w_gate, b_gate)
    assert out.shape == (batch, hidden_dim)
    assert jnp.allclose(out, ref, atol=1e-5, rtol=1e-5), "mismatch vs reference"

    print("KERNEL_OK")
</pallas_src>

<mosaic_0001>
module attributes {stable_mosaic.version = 11 : i64} {
  func.func @highway_kernel(%arg0: i32, %arg1: memref<16x32xf32, #tpu.memory_space<vmem>>, %arg2: memref<32x64xf32, #tpu.memory_space<vmem>>, %arg3: memref<1x64xf32, #tpu.memory_space<vmem>>, %arg4: memref<16x32xf32, #tpu.memory_space<vmem>>) attributes {dimension_semantics = [#tpu.dimension_semantics<parallel>], iteration_bounds = array<i64: 1>, scalar_prefetch = 0 : i64, scratch_operands = 0 : i64, tpu.core_type = #tpu.core_type<tc>, window_params = [{transform_indices = @transform_0, window_bounds = array<i64: 16, 32>}, {pipeline_mode = #tpu.pipeline_mode<synchronous>, transform_indices = @transform_1, window_bounds = array<i64: 32, 64>}, {pipeline_mode = #tpu.pipeline_mode<synchronous>, transform_indices = @transform_2, window_bounds = array<i64: 1, 64>}, {transform_indices = @transform_3, window_bounds = array<i64: 16, 32>}]} {
    %c0 = arith.constant 0 : index
    %c0_0 = arith.constant 0 : index
    %0 = vector.load %arg1[%c0, %c0_0] : memref<16x32xf32, #tpu.memory_space<vmem>>, vector<16x32xf32>
    %c0_1 = arith.constant 0 : index
    %c0_2 = arith.constant 0 : index
    %1 = vector.load %arg2[%c0_1, %c0_2] : memref<32x64xf32, #tpu.memory_space<vmem>>, vector<32x64xf32>
    %cst = arith.constant dense<0.000000e+00> : vector<16x64xf32>
    %2 = tpu.matmul %0, %1, %cst {dimension_numbers = #tpu.dot_dimension_numbers<[1], [0], [0], [1], [0, 0, 1, 1], [], []>} : vector<16x32xf32>, vector<32x64xf32>, vector<16x64xf32> -> vector<16x64xf32>
    %c0_3 = arith.constant 0 : index
    %c0_4 = arith.constant 0 : index
    %3 = vector.load %arg3[%c0_3, %c0_4] : memref<1x64xf32, #tpu.memory_space<vmem>>, vector<1x64xf32>
    %4 = vector.broadcast %3 : vector<1x64xf32> to vector<16x64xf32>
    %5 = arith.addf %2, %4 : vector<16x64xf32>
    %6 = vector.extract_strided_slice %5 {offsets = [0, 0], sizes = [16, 32], strides = [1, 1]} : vector<16x64xf32> to vector<16x32xf32>
    %cst_5 = arith.constant 0.000000e+00 : f32
    %7 = vector.broadcast %cst_5 : f32 to vector<16x32xf32>
    %8 = arith.maximumf %6, %7 : vector<16x32xf32>
    %9 = vector.extract_strided_slice %5 {offsets = [0, 32], sizes = [16, 32], strides = [1, 1]} : vector<16x64xf32> to vector<16x32xf32>
    %10 = arith.negf %9 : vector<16x32xf32>
    %11 = math.exp %10 : vector<16x32xf32>
    %cst_6 = arith.constant 1.000000e+00 : f32
    %12 = vector.broadcast %cst_6 : f32 to vector<16x32xf32>
    %13 = arith.addf %12, %11 : vector<16x32xf32>
    %14 = arith.divf %12, %13 : vector<16x32xf32>
    %15 = arith.mulf %8, %14 : vector<16x32xf32>
    %cst_7 = arith.constant 1.000000e+00 : f32
    %16 = vector.broadcast %cst_7 : f32 to vector<16x32xf32>
    %17 = arith.subf %16, %14 : vector<16x32xf32>
    %18 = arith.mulf %17, %8 : vector<16x32xf32>
    %19 = arith.addf %15, %18 : vector<16x32xf32>
    %c0_8 = arith.constant 0 : index
    %c0_9 = arith.constant 0 : index
    %20 = vector.load %arg4[%c0_8, %c0_9] : memref<16x32xf32, #tpu.memory_space<vmem>>, vector<16x32xf32>
    tpu.vector_store %arg4[%c0_8, %c0_9], %19 {strides = array<i32>} : memref<16x32xf32, #tpu.memory_space<vmem>>, vector<16x32xf32>,
    return
  }
  func.func @transform_0(%arg0: i32) -> (i32, i32) {
    %c0_i32 = arith.constant 0 : i32
    %c0_i32_0 = arith.constant 0 : i32
    return %arg0, %c0_i32 : i32, i32
  }
  func.func @transform_1(%arg0: i32) -> (i32, i32) {
    %c0_i32 = arith.constant 0 : i32
    %c0_i32_0 = arith.constant 0 : i32
    %c0_i32_1 = arith.constant 0 : i32
    return %c0_i32, %c0_i32_0 : i32, i32
  }
  func.func @transform_2(%arg0: i32) -> (i32, i32) {
    %c0_i32 = arith.constant 0 : i32
    %c0_i32_0 = arith.constant 0 : i32
    %c0_i32_1 = arith.constant 0 : i32
    return %c0_i32, %c0_i32_0 : i32, i32
  }
  func.func @transform_3(%arg0: i32) -> (i32, i32) {
    %c0_i32 = arith.constant 0 : i32
    %c0_i32_0 = arith.constant 0 : i32
    return %arg0, %c0_i32 : i32, i32
  }
}

</mosaic_0001>

<llo_original>
// kernel: tpu_custom_call.1
$region0: #{tpu_custom_call.1}
  #allocation0 [shape = 'u32[]', space=smem, size = 0x4, offset = 0x4, fixed_abs, tag = 'smem constant byte address 0x4 - core index']
  #allocation1 [shape = 'u32[144,128]{1,0:T(1,128)}', space=vmem, size = 0x12000, scoped, tag = 'internal scratch']
  %s0 = inlined_call_operand.hbm [shape: f32[16,32], index: 0, kind: input, shape index: {}]
  %s1 = inlined_call_operand.hbm [shape: f32[32,64], index: 1, kind: input, shape index: {}]
  %s2 = inlined_call_operand.vmem [shape: f32[1,64], index: 2, kind: input, shape index: {}]
  %s3 = inlined_call_operand.hbm [shape: f32[16,32], index: 3, kind: output, shape index: {}]
  %s4 = sld [smem:[#allocation0]]
  $region30: #{tpu_custom_call.1} parent=0
    _
  %s6 = ssub.s32 1, %s4
  %s7 = scalar_select 0, %s6, %s4
  $region1: #{tpu_custom_call.1} parent=0
    #allocation2 [shape = 'u8[8192]{0}', space=vmem, size = 0x2000, scoped, tag = 'input window, operand 0, single buffered']
    #allocation3 [shape = 's32[1]{0}', space=sflag, size = 0x4, scoped, tag = 'scoped memory for tpu_custom_call.1']
    #allocation4 [shape = 's32[1]{0}', space=sflag, size = 0x4, scoped, tag = 'scoped memory for tpu_custom_call.1']
    #allocation5 [shape = 'u8[16384]{0}', space=vmem, size = 0x4000, scoped, tag = 'input window, operand 1, single buffered']
    #allocation6 [shape = 's32[1]{0}', space=sflag, size = 0x4, scoped, tag = 'scoped memory for tpu_custom_call.1']
    #allocation7 [shape = 'u8[8192]{0}', space=vmem, size = 0x2000, scoped, tag = 'output window, operand 0, single buffered']
    %8 = vsyncpa [#allocation3], 0
    %9 = vsyncpa [#allocation6], 0
    %10 = vsyncpa [#allocation4], 0
    // Predicated region
    $region2: #{tpu_custom_call.1} parent=1 // pred_check
      _
    $region3: #{tpu_custom_call.1} parent=1 // pred_check_branch
      %12 = sbr.rel (0) target = $region5
    $region4: #{tpu_custom_call.1} parent=1 // pred_region
      %s14 = ssub.s32 256, 256
      %15 = vsyncadd [#allocation3], %s14
      %s16 = sshll.u32 [#allocation2], 4
      %s17 = int_to_ptr.vmem [resolvable:$true] %s16
      %22 = dma.hbm_to_vmem [thread:$0]  %s0, 256, %s17, [#allocation3], 128, 128, 8
    $region5: #{tpu_custom_call.1} parent=1 // pred_fallthru
      _
    // Predicated region
    $region6: #{tpu_custom_call.1} parent=1 // pred_check
      _
    $region7: #{tpu_custom_call.1} parent=1 // pred_check_branch
      %24 = sbr.rel (0) target = $region9
    $region8: #{tpu_custom_call.1} parent=1 // pred_region
      %s26 = ssub.s32 512, 512
      %27 = vsyncadd [#allocation6], %s26
      %s28 = sshll.u32 [#allocation5], 4
      %s29 = int_to_ptr.vmem [resolvable:$true] %s28
      %34 = dma.hbm_to_vmem [thread:$0]  %s1, 512, %s29, [#allocation6], 128, 128, 8
    $region9: #{tpu_custom_call.1} parent=1 // pred_fallthru
      _
    // Predicated region
    $region10: #{tpu_custom_call.1} parent=1 // pred_check
      _
    $region11: #{tpu_custom_call.1} parent=1 // pred_check_branch
      %36 = sbr.rel (0) target = $region13
    $region12: #{tpu_custom_call.1} parent=1 // pred_region
      _
    $region13: #{tpu_custom_call.1} parent=1 // pred_fallthru
      _
    // Predicated region
    $region14: #{tpu_custom_call.1} parent=1 // pred_check
      _
    $region15: #{tpu_custom_call.1} parent=1 // pred_check_branch
      %38 = sbr.rel (0) target = $region17
    $region16: #{tpu_custom_call.1} parent=1 // pred_region
      %39 = dma.done [#allocation3], 256
    $region17: #{tpu_custom_call.1} parent=1 // pred_fallthru
      _
    // Predicated region
    $region18: #{tpu_custom_call.1} parent=1 // pred_check
      _
    $region19: #{tpu_custom_call.1} parent=1 // pred_check_branch
      %41 = sbr.rel (0) target = $region21
    $region20: #{tpu_custom_call.1} parent=1 // pred_region
      %42 = dma.done [#allocation6], 512
    $region21: #{tpu_custom_call.1} parent=1 // pred_fallthru
      _
    %v43 = vld [vmem:[#allocation2] sm:$0xff]
    %v44 = vld [vmem:[#allocation2 + $0x8] sm:$0xff]
    %v45 = vld [vmem:[#allocation5] sm:$0xff]
    %v46 = vld [vmem:[#allocation5 + $0x8] sm:$0xff]
    %v47 = vld [vmem:[#allocation5 + $0x10] sm:$0xff]
    %v48 = vld [vmem:[#allocation5 + $0x18] sm:$0xff]
    %v49 = vld [vmem:[%s2] sm:$0x1]
    %v51 = vlaneseq
    %v52 = vshrl.u32 %v51, 7
    %v53 = vsub.s32 0, %v52
    %v54 = vrot.slane %v49, %v53
    %vm56 = vcmask 261120
    %v58 = vsel %vm56, %v43, 0
    %v61 = vsel %vm56, %v44, 0
    %63 = vmatprep.subr.mxu0 0.0
    %64 = vmatpush1.msra.mxu0 0.0
    %65 = vmatprep.subr.mxu0 0.0
    %66 = vmatpush1.msra.mxu0 0.0
    %67 = vmatprep.subr.mxu0 0.0
    %68 = vmatpush1.msra.mxu0 0.0
    %69 = vmatprep.subr.mxu0 0.0
    %70 = vmatpush1.msra.mxu0 0.0
    %71 = vmatprep.subr.mxu0 0.0
    %72 = vmatpush1.msra.mxu0 0.0
    %73 = vmatprep.subr.mxu0 0.0
    %74 = vmatpush1.msra.mxu0 0.0
    %75 = vmatprep.subr.mxu0 0.0
    %76 = vmatpush1.msra.mxu0 0.0
    %77 = vmatprep.subr.mxu0 0.0
    %78 = vmatpush1.msra.mxu0 0.0
    %79 = vmatprep.subr.mxu0 0.0
    %80 = vmatpush1.msra.mxu0 0.0
    %81 = vmatprep.subr.mxu0 0.0
    %82 = vmatpush1.msra.mxu0 0.0
    %83 = vmatprep.subr.mxu0 0.0
    %84 = vmatpush1.msra.mxu0 0.0
    %85 = vmatprep.subr.mxu0 0.0
    %86 = vmatpush1.msra.mxu0 0.0
    %87 = vmatprep.subr.mxu0 0.0
    %88 = vmatpush1.msra.mxu0 %v48
    %89 = vmatprep.subr.mxu0 0.0
    %90 = vmatpush1.msra.mxu0 %v47
    %91 = vmatprep.subr.mxu0 0.0
    %92 = vmatpush1.msra.mxu0 %v46
    %93 = vmatprep.subr.mxu0 0.0
    %94 = vmatpush1.msra.mxu0 %v45
    %95 = vmatprep.subr.mxu0 0.0
    %96 = vmatpush2.msra.mxu0 0.0
    %97 = vmatprep.subr.mxu0 0.0
    %98 = vmatpush2.msra.mxu0 0.0
    %99 = vmatprep.subr.mxu0 0.0
    %100 = vmatpush2.msra.mxu0 0.0
    %101 = vmatprep.subr.mxu0 0.0
    %102 = vmatpush2.msra.mxu0 0.0
    %103 = vmatprep.subr.mxu0 0.0
    %104 = vmatpush2.msra.mxu0 0.0
    %105 = vmatprep.subr.mxu0 0.0
    %106 = vmatpush2.msra.mxu0 0.0
    %107 = vmatprep.subr.mxu0 0.0
    %108 = vmatpush2.msra.mxu0 0.0
    %109 = vmatprep.subr.mxu0 0.0
    %110 = vmatpush2.msra.mxu0 0.0
    %111 = vmatprep.subr.mxu0 0.0
    %112 = vmatpush2.msra.mxu0 0.0
    %113 = vmatprep.subr.mxu0 0.0
    %114 = vmatpush2.msra.mxu0 0.0
    %115 = vmatprep.subr.mxu0 0.0
    %116 = vmatpush2.msra.mxu0 0.0
    %117 = vmatprep.subr.mxu0 0.0
    %118 = vmatpush2.msra.mxu0 0.0
    %119 = vmatprep.subr.mxu0 0.0
    %120 = vmatpush2.msra.mxu0 0.0
    %121 = vmatprep.subr.mxu0 0.0
    %122 = vmatpush2.msra.mxu0 0.0
    %123 = vmatprep.subr.mxu0 0.0
    %124 = vmatpush2.msra.mxu0 0.0
    %125 = vmatprep.subr.mxu0 0.0
    %126 = vmatpush2.msra.mxu0 0.0
    %127 = vmatprep.mubr.f32.mxu0 0.0
    %128 = vmatmul.mubr.f32.gmra.mxu0 %v58
    %v129 = vpop.f32.mrf.mxu0
    %v130 = vadd.f32 %v54, %v129
    %v131 = vpop.f32.mrf.mxu0
    %132 = vmatprep.mubr.f32.mxu0 0.0
    %133 = vmatmul.mubr.f32.gmra.mxu0 %v61
    %v134 = vpop.f32.mrf.mxu0
    %v135 = vadd.f32 %v54, %v134
    %v136 = vpop.f32.mrf.mxu0
    %137 = vdwg.mxu0
    %v138 = vmax.f32 %v130, 0.0
    %v139 = vmax.f32 %v135, 0.0
    %v140 = vxor.u32 %v130, 2147483648
    %v141 = vxor.u32 %v135, 2147483648
    %v142 = vmul.f32 %v140, 1.442695
    %v143 = vpow.pop %v142
    %v144 = vmul.f32 %v141, 1.442695
    %v145 = vpow.pop %v144
    %v146 = vadd.f32 %v143, 1.0
    %v147 = vadd.f32 %v145, 1.0
    %v148 = vrcp.pop %v146
    %v149 = vmul.f32 1.0, %v148
    %v150 = vrcp.pop %v147
    %v151 = vmul.f32 1.0, %v150
    %154 = vrot.lane.b32.xlu0 %v149, 96
    %v155 = vpop.permute.xlu0 %154
    %156 = vrot.lane.b32.xlu0 %v151, 96
    %v157 = vpop.permute.xlu0 %156
    %v160 = vmul.f32 %v138, %v155
    %v161 = vmul.f32 %v139, %v157
    %v162 = vsub.f32 1.0, %v149
    %v163 = vsub.f32 1.0, %v151
    %166 = vrot.lane.b32.xlu0 %v138, 32
    %v167 = vpop.permute.xlu0 %166
    %168 = vrot.lane.b32.xlu0 %v139, 32
    %v169 = vpop.permute.xlu0 %168
    %v172 = vmul.f32 %v162, %v167
    %v173 = vmul.f32 %v163, %v169
    %176 = vrot.lane.b32.xlu0 %v172, 96
    %v177 = vpop.permute.xlu0 %176
    %178 = vrot.lane.b32.xlu0 %v173, 96
    %v179 = vpop.permute.xlu0 %178
    %v182 = vadd.f32 %v160, %v177
    %v183 = vadd.f32 %v161, %v179
    %184 = vst.msk [vmem:[#allocation7] sm:$0xff] %vm56, %v182
    %185 = vst.msk [vmem:[#allocation7 + $0x8] sm:$0xff] %vm56, %v183
    // Predicated region
    $region22: #{tpu_custom_call.1} parent=1 // pred_check
      _
    $region23: #{tpu_custom_call.1} parent=1 // pred_check_branch
      %187 = sbr.rel (0) target = $region25
    $region24: #{tpu_custom_call.1} parent=1 // pred_region
      %s189 = ssub.s32 256, 256
      %190 = vsyncadd [#allocation4], %s189
      %s191 = sshll.u32 [#allocation7], 4
      %s192 = int_to_ptr.vmem [resolvable:$true] %s191
      %197 = dma.vmem_to_hbm [thread:$0]  %s192, 256, %s3, [#allocation4], 128, 128, 8
    $region25: #{tpu_custom_call.1} parent=1 // pred_fallthru
      _
    // Predicated region
    $region26: #{tpu_custom_call.1} parent=1 // pred_check
      _
    $region27: #{tpu_custom_call.1} parent=1 // pred_check_branch
      %199 = sbr.rel (0) target = $region29
    $region28: #{tpu_custom_call.1} parent=1 // pred_region
      %200 = dma.done [#allocation4], 256
    $region29: #{tpu_custom_call.1} parent=1 // pred_fallthru
      _
    %201 = vsyncpa [#allocation3], 1
    %202 = vsyncpa [#allocation6], 1
    %203 = vsyncpa [#allocation4], 1

</llo_original>
